<compile_context>
chip_gen: v7x
topology: tpu7x:2x2x1
jax: 0.10.0
libtpu: 0.0.40
codegen_flags: <defaults>
</compile_context>

<pallas_src>
import functools

import jax
import jax.numpy as jnp
from jax.experimental import pallas as pl
from jax.experimental.pallas import tpu as pltpu

# ---------------------------------------------------------------------------
# Deterministic "config" (mirrors the torch module's __init__ arguments).
CONFIG = {"regular": "l2", "lambda": 0.1, "mu": 0.01}


def _loss_kernel(pt_ref, pc_ref, out_ref, *, lam, mu, regular,
                 inv_bce_n, inv_n):
    # pt_ref: [2, B]    row 0 = predictions, row 1 = truth      (lane-major)
    # pc_ref: [2, B*H]  row 0 = item_personality, row 1 = item_commonality
    p = pt_ref[0:1, :].astype(jnp.float32)       # [1, B]
    t = pt_ref[1:2, :].astype(jnp.float32)       # [1, B]
    pers = pc_ref[0:1, :].astype(jnp.float32)    # [1, B*H]
    comm = pc_ref[1:2, :].astype(jnp.float32)    # [1, B*H]

    # --- BCELoss (sum here; mean applied via inv_bce_n at the end). ---
    # PyTorch clamps each log term at -100.
    log_p = jnp.maximum(jnp.log(p), -100.0)
    log_1mp = jnp.maximum(jnp.log(1.0 - p), -100.0)
    # -(t*log_p + (1-t)*log_1mp) == -(log_1mp + t*(log_p - log_1mp))
    bce_sum = -jnp.sum(log_1mp + t * (log_p - log_1mp), keepdims=True)  # [1,1]

    # --- Fused independence-MSE + regularizer: one elementwise pass and one
    #     full reduction over the [1, B*H] slab. ---
    diff = pers - comm
    fused = -lam * (diff * diff)
    if regular == "l1":
        fused = fused + mu * jnp.abs(comm)           # L1Loss vs zeros
    elif regular in ("none", "inf", "nuc"):
        pass  # 'none': mu == 0; 'inf' handled below; 'nuc' unsupported.
    else:  # 'l2' and any other value -> MSELoss vs zeros
        fused = fused + mu * (comm * comm)
    fused_sum = jnp.sum(fused, keepdims=True)        # [1,1]

    total = bce_sum * inv_bce_n + fused_sum * inv_n  # [1,1]
    if regular == "inf":
        # torch.norm(p=inf) = max(|comm|), not mean-reduced.
        total = total + mu * jnp.max(jnp.abs(comm), keepdims=True)
    # TODO(synk): 'nuc' (nuclear norm via SVD) has no clean Pallas equivalent.

    out_ref[...] = total


def pallas_loss(predictions, truth, item_personality, item_commonality,
                config=CONFIG):
    regular = config["regular"]
    lam = float(config["lambda"])
    mu = 0.0 if regular == "none" else float(config["mu"])

    n_pred = predictions.size                 # B * 1
    n_items = item_commonality.size           # B * H

    # Lane-dense packing -> 2 DMAs total, static slices inside the kernel.
    pt = jnp.concatenate(
        [predictions.reshape(1, n_pred), truth.reshape(1, n_pred)], axis=0)
    pc = jnp.concatenate(
        [item_personality.reshape(1, n_items),
         item_commonality.reshape(1, n_items)], axis=0)

    kernel = functools.partial(
        _loss_kernel, lam=lam, mu=mu, regular=regular,
        inv_bce_n=1.0 / n_pred, inv_n=1.0 / n_items)

    out = pl.pallas_call(
        kernel,
        out_shape=jax.ShapeDtypeStruct((1, 1), jnp.float32),
        in_specs=[
            pl.BlockSpec(memory_space=pltpu.MemorySpace.VMEM),
            pl.BlockSpec(memory_space=pltpu.MemorySpace.VMEM),
        ],
        out_specs=pl.BlockSpec(memory_space=pltpu.MemorySpace.VMEM),
    )(pt, pc)
    return out[0, 0]


def reference_loss(predictions, truth, item_personality, item_commonality,
                   config=CONFIG):
    p = predictions.astype(jnp.float32)
    t = truth.astype(jnp.float32)
    bce = jnp.mean(-(t * jnp.maximum(jnp.log(p), -100.0)
                     + (1.0 - t) * jnp.maximum(jnp.log(1.0 - p), -100.0)))
    mse_ind = jnp.mean((item_personality - item_commonality) ** 2)
    if config["regular"] == "l1":
        third = jnp.mean(jnp.abs(item_commonality))
        mu = config["mu"]
    elif config["regular"] == "none":
        third = 0.0
        mu = 0.0
    else:  # 'l2' and default
        third = jnp.mean(item_commonality ** 2)
        mu = config["mu"]
    return bce - config["lambda"] * mse_ind + mu * third


if __name__ == "__main__":
    key = jax.random.PRNGKey(0)
    k1, k2, k3, k4 = jax.random.split(key, 4)

    B, H = 8, 32
    # predictions must be in (0, 1) for BCE -> sigmoid of random logits.
    predictions = jax.nn.sigmoid(jax.random.normal(k1, (B, 1), jnp.float32))
    truth = (jax.random.uniform(k2, (B, 1)) > 0.5).astype(jnp.float32)
    item_personality = jax.random.normal(k3, (B, H), jnp.float32)
    item_commonality = jax.random.normal(k4, (B, H), jnp.float32)

    loss = pallas_loss(predictions, truth, item_personality, item_commonality)
    loss = jax.block_until_ready(loss)

    ref = reference_loss(predictions, truth, item_personality, item_commonality)
    assert jnp.allclose(loss, ref, rtol=1e-5, atol=1e-5), (loss, ref)
    print("KERNEL_OK")
</pallas_src>

<mosaic_0001>
module attributes {stable_mosaic.version = 11 : i64} {
  func.func @_loss_kernel(%arg0: memref<2x8xf32, #tpu.memory_space<vmem>>, %arg1: memref<2x256xf32, #tpu.memory_space<vmem>>, %arg2: memref<1x1xf32, #tpu.memory_space<vmem>>) attributes {dimension_semantics = [], scalar_prefetch = 0 : i64, scratch_operands = 0 : i64, tpu.core_type = #tpu.core_type<tc>} {
    %c0 = arith.constant 0 : index
    %c0_0 = arith.constant 0 : index
    %0 = vector.load %arg0[%c0, %c0_0] : memref<2x8xf32, #tpu.memory_space<vmem>>, vector<1x8xf32>
    %c1 = arith.constant 1 : index
    %c0_1 = arith.constant 0 : index
    %1 = vector.load %arg0[%c1, %c0_1] : memref<2x8xf32, #tpu.memory_space<vmem>>, vector<1x8xf32>
    %c0_2 = arith.constant 0 : index
    %c0_3 = arith.constant 0 : index
    %2 = vector.load %arg1[%c0_2, %c0_3] : memref<2x256xf32, #tpu.memory_space<vmem>>, vector<1x256xf32>
    %c1_4 = arith.constant 1 : index
    %c0_5 = arith.constant 0 : index
    %3 = vector.load %arg1[%c1_4, %c0_5] : memref<2x256xf32, #tpu.memory_space<vmem>>, vector<1x256xf32>
    %4 = math.log %0 : vector<1x8xf32>
    %cst = arith.constant -1.000000e+02 : f32
    %5 = vector.broadcast %cst : f32 to vector<1x8xf32>
    %6 = arith.maximumf %4, %5 : vector<1x8xf32>
    %cst_6 = arith.constant 1.000000e+00 : f32
    %7 = vector.broadcast %cst_6 : f32 to vector<1x8xf32>
    %8 = arith.subf %7, %0 : vector<1x8xf32>
    %9 = math.log %8 : vector<1x8xf32>
    %cst_7 = arith.constant -1.000000e+02 : f32
    %10 = vector.broadcast %cst_7 : f32 to vector<1x8xf32>
    %11 = arith.maximumf %9, %10 : vector<1x8xf32>
    %12 = arith.subf %6, %11 : vector<1x8xf32>
    %13 = arith.mulf %1, %12 : vector<1x8xf32>
    %14 = arith.addf %11, %13 : vector<1x8xf32>
    %15 = vector.shape_cast %14 : vector<1x8xf32> to vector<1x1x8xf32>
    %cst_8 = arith.constant dense<0.000000e+00> : vector<1xf32>
    %16 = vector.multi_reduction <add>, %15, %cst_8 [1, 2] : vector<1x1x8xf32> to vector<1xf32>
    %17 = vector.shape_cast %16 : vector<1xf32> to vector<1x1x1xf32>
    %18 = vector.extract %17[0, 0, 0] : f32 from vector<1x1x1xf32>
    %19 = vector.broadcast %18 : f32 to vector<1x1xf32>
    %cst_9 = arith.constant 0.000000e+00 : f32
    %20 = vector.broadcast %cst_9 : f32 to vector<1x1xf32>
    %21 = arith.subf %20, %19 : vector<1x1xf32>
    %22 = arith.subf %2, %3 : vector<1x256xf32>
    %23 = arith.mulf %22, %22 : vector<1x256xf32>
    %cst_10 = arith.constant -1.000000e-01 : f32
    %24 = vector.broadcast %cst_10 : f32 to vector<1x256xf32>
    %25 = arith.mulf %24, %23 : vector<1x256xf32>
    %26 = arith.mulf %3, %3 : vector<1x256xf32>
    %cst_11 = arith.constant 0.00999999977 : f32
    %27 = vector.broadcast %cst_11 : f32 to vector<1x256xf32>
    %28 = arith.mulf %27, %26 : vector<1x256xf32>
    %29 = arith.addf %25, %28 : vector<1x256xf32>
    %30 = vector.shape_cast %29 : vector<1x256xf32> to vector<1x1x256xf32>
    %cst_12 = arith.constant dense<0.000000e+00> : vector<1xf32>
    %31 = vector.multi_reduction <add>, %30, %cst_12 [1, 2] : vector<1x1x256xf32> to vector<1xf32>
    %32 = vector.shape_cast %31 : vector<1xf32> to vector<1x1x1xf32>
    %33 = vector.extract %32[0, 0, 0] : f32 from vector<1x1x1xf32>
    %34 = vector.broadcast %33 : f32 to vector<1x1xf32>
    %cst_13 = arith.constant 1.250000e-01 : f32
    %35 = vector.broadcast %cst_13 : f32 to vector<1x1xf32>
    %36 = arith.mulf %21, %35 : vector<1x1xf32>
    %cst_14 = arith.constant 3.906250e-03 : f32
    %37 = vector.broadcast %cst_14 : f32 to vector<1x1xf32>
    %38 = arith.mulf %34, %37 : vector<1x1xf32>
    %39 = arith.addf %36, %38 : vector<1x1xf32>
    %c0_15 = arith.constant 0 : index
    %c0_16 = arith.constant 0 : index
    %40 = vector.load %arg2[%c0_15, %c0_16] : memref<1x1xf32, #tpu.memory_space<vmem>>, vector<1x1xf32>
    tpu.vector_store %arg2[%c0_15, %c0_16], %39 {strides = array<i32>} : memref<1x1xf32, #tpu.memory_space<vmem>>, vector<1x1xf32>,
    return
  }
}

</mosaic_0001>

<llo_original>
// kernel: tpu_custom_call.1
$region0: #{tpu_custom_call.1}
  #allocation0 [shape = 'u32[]', space=smem, size = 0x4, offset = 0x4, fixed_abs, tag = 'smem constant byte address 0x4 - core index']
  #allocation1 [shape = 'u32[144,128]{1,0:T(1,128)}', space=vmem, size = 0x12000, scoped, tag = 'internal scratch']
  %s0 = inlined_call_operand.hbm [shape: f32[2,8], index: 0, kind: input, shape index: {}]
  %s1 = inlined_call_operand.hbm [shape: f32[2,256], index: 1, kind: input, shape index: {}]
  %s2 = inlined_call_operand.hbm [shape: f32[1,1], index: 2, kind: output, shape index: {}]
  %s3 = sld [smem:[#allocation0]]
  $region26: #{tpu_custom_call.1} parent=0
    _
  %s5 = ssub.s32 1, %s3
  %s6 = scalar_select 0, %s5, %s3
  $region1: #{tpu_custom_call.1} parent=0
    #allocation2 [shape = 'u8[1024]{0}', space=vmem, size = 0x400, scoped, tag = 'input window, operand 0, single buffered']
    #allocation3 [shape = 's32[1]{0}', space=sflag, size = 0x4, scoped, tag = 'scoped memory for tpu_custom_call.1']
    #allocation4 [shape = 's32[1]{0}', space=sflag, size = 0x4, scoped, tag = 'scoped memory for tpu_custom_call.1']
    #allocation5 [shape = 'u8[2048]{0}', space=vmem, size = 0x800, scoped, tag = 'input window, operand 1, single buffered']
    #allocation6 [shape = 's32[1]{0}', space=sflag, size = 0x4, scoped, tag = 'scoped memory for tpu_custom_call.1']
    #allocation7 [shape = 'u8[512]{0}', space=vmem, size = 0x400, scoped, tag = 'output window, operand 0, single buffered']
    %7 = vsyncpa [#allocation3], 0
    %8 = vsyncpa [#allocation6], 0
    %9 = vsyncpa [#allocation4], 0
    // Predicated region
    $region2: #{tpu_custom_call.1} parent=1 // pred_check
      _
    $region3: #{tpu_custom_call.1} parent=1 // pred_check_branch
      %11 = sbr.rel (0) target = $region5
    $region4: #{tpu_custom_call.1} parent=1 // pred_region
      %s13 = ssub.s32 32, 32
      %14 = vsyncadd [#allocation3], %s13
      %s16 = sshll.u32 [#allocation2], 4
      %s17 = int_to_ptr.vmem [resolvable:$true] %s16
      %19 = dma.hbm_to_vmem [thread:$0]  %s0, 32, %s17, [#allocation3]
    $region5: #{tpu_custom_call.1} parent=1 // pred_fallthru
      _
    // Predicated region
    $region6: #{tpu_custom_call.1} parent=1 // pred_check
      _
    $region7: #{tpu_custom_call.1} parent=1 // pred_check_branch
      %21 = sbr.rel (0) target = $region9
    $region8: #{tpu_custom_call.1} parent=1 // pred_region
      %s23 = ssub.s32 64, 64
      %24 = vsyncadd [#allocation6], %s23
      %s26 = sshll.u32 [#allocation5], 4
      %s27 = int_to_ptr.vmem [resolvable:$true] %s26
      %29 = dma.hbm_to_vmem [thread:$0]  %s1, 64, %s27, [#allocation6]
    $region9: #{tpu_custom_call.1} parent=1 // pred_fallthru
      _
    // Predicated region
    $region10: #{tpu_custom_call.1} parent=1 // pred_check
      _
    $region11: #{tpu_custom_call.1} parent=1 // pred_check_branch
      %31 = sbr.rel (0) target = $region13
    $region12: #{tpu_custom_call.1} parent=1 // pred_region
      %32 = dma.done [#allocation3], 32
    $region13: #{tpu_custom_call.1} parent=1 // pred_fallthru
      _
    // Predicated region
    $region14: #{tpu_custom_call.1} parent=1 // pred_check
      _
    $region15: #{tpu_custom_call.1} parent=1 // pred_check_branch
      %34 = sbr.rel (0) target = $region17
    $region16: #{tpu_custom_call.1} parent=1 // pred_region
      %35 = dma.done [#allocation6], 64
    $region17: #{tpu_custom_call.1} parent=1 // pred_fallthru
      _
    %v36 = vld [vmem:[#allocation2] sm:$0x1]
    %v37 = vld [vmem:[#allocation2 + $0x1] sm:$0x1]
    %v38 = vld [vmem:[#allocation5] ss:$2 sm:$0x3]
    %s39 = scalar_lea.vmem [#allocation5], 1
    %v40 = vld [vmem:[%s39] ss:$2 sm:$0x3]
    %v41 = vlog2.pop %v36
    %v42 = vmul.f32 %v41, 0.6931472
    %v43 = vmax.f32 %v42, -100.0
    %v44 = vsub.f32 1.0, %v36
    %v45 = vlog2.pop %v44
    %v46 = vmul.f32 %v45, 0.6931472
    %v47 = vmax.f32 %v46, -100.0
    %v48 = vsub.f32 %v43, %v47
    %v49 = vmul.f32 %v37, %v48
    %v50 = vadd.f32 %v47, %v49
    %vm51 = vcmask 57344
    %v52 = vsel %vm51, %v50, 0.0
    %53 = vadd.xlane.f32.xlu0 %v52
    %v54 = vpop.xlane.xlu0 %53
    %v55 = vrot.slane %v54, 4
    %v56 = vadd.f32 %v54, %v55
    %v57 = vrot.slane %v56, 2
    %v58 = vadd.f32 %v56, %v57
    %v59 = vrot.slane %v58, 1
    %v60 = vadd.f32 %v58, %v59
    %s61 = vtos %v60
    %v62 = vstv %s61
    %v63 = vsub.f32 0.0, %v62
    %v64 = vsub.f32 %v38, %v40
    %v65 = vmul.f32 %v64, %v64
    %v66 = vmul.f32 %v65, -0.1
    %v67 = vmul.f32 %v40, %v40
    %v68 = vmul.f32 %v67, 0.01
    %v69 = vadd.f32 %v66, %v68
    %v71 = vlaneseq
    %v72 = vshrl.u32 %v71, 7
    %v73 = vsub.s32 0, %v72
    %v74 = vrot.slane %v69, %v73
    %v75 = vlaneseq
    %v76 = vshrl.u32 %v75, 7
    %v77 = vsub.s32 1, %v76
    %v78 = vrot.slane %v69, %v77
    %vm81 = vcmask 1040384
    %v82 = vsel %vm81, %v74, 0.0
    %v83 = vsel %vm81, %v78, 0.0
    %v84 = vadd.f32 %v82, %v83
    %85 = vadd.xlane.f32.xlu0 %v84
    %v86 = vpop.xlane.xlu0 %85
    %v87 = vrot.slane %v86, 4
    %v88 = vadd.f32 %v86, %v87
    %v89 = vrot.slane %v88, 2
    %v90 = vadd.f32 %v88, %v89
    %v91 = vrot.slane %v90, 1
    %v92 = vadd.f32 %v90, %v91
    %s93 = vtos %v92
    %v94 = vstv %s93
    %v95 = vmul.f32 %v63, 0.125
    %v96 = vmul.f32 %v94, 0.00390625
    %v97 = vadd.f32 %v95, %v96
    %vm98 = vcmask 0
    %99 = vst.msk [vmem:[#allocation7] sm:$0x1] %vm98, %v97
    // Predicated region
    $region18: #{tpu_custom_call.1} parent=1 // pred_check
      _
    $region19: #{tpu_custom_call.1} parent=1 // pred_check_branch
      %101 = sbr.rel (0) target = $region21
    $region20: #{tpu_custom_call.1} parent=1 // pred_region
      %s103 = ssub.s32 16, 16
      %104 = vsyncadd [#allocation4], %s103
      %s106 = sshll.u32 [#allocation7], 4
      %s107 = int_to_ptr.vmem [resolvable:$true] %s106
      %109 = dma.vmem_to_hbm [thread:$0]  %s107, 16, %s2, [#allocation4]
    $region21: #{tpu_custom_call.1} parent=1 // pred_fallthru
      _
    // Predicated region
    $region22: #{tpu_custom_call.1} parent=1 // pred_check
      _
    $region23: #{tpu_custom_call.1} parent=1 // pred_check_branch
      %111 = sbr.rel (0) target = $region25
    $region24: #{tpu_custom_call.1} parent=1 // pred_region
      %112 = dma.done [#allocation4], 16
    $region25: #{tpu_custom_call.1} parent=1 // pred_fallthru
      _
    %113 = vsyncpa [#allocation3], 1
    %114 = vsyncpa [#allocation6], 1
    %115 = vsyncpa [#allocation4], 1

</llo_original>
